<compile_context>
chip_gen: v5e
topology: v5e:2x2
jax: 0.10.0
libtpu: 0.0.40
codegen_flags: <defaults>
</compile_context>

<pallas_src>
import jax
import jax.numpy as jnp
from jax import lax
from jax.experimental import pallas as pl
from jax.experimental.pallas import tpu as pltpu


def _patch_merge_kernel(xe_ref, xo_ref, we_ref, wo_ref, csum_ref, bias_ref,
                        o_ref):
    # xe_ref / xo_ref: (tr, W/2, 2C)  even / odd h-row halves of the merged
    #                  tokens; channels = [w-even (C) | w-odd (C)].
    # we_ref / wo_ref: (2C, Nout)     gamma-folded Linear weight rows per half
    #                  (matmul dtype, e.g. bf16).
    # csum_ref:        (1, Nout)      column sums of the gamma-folded weight
    #                  (= gamma @ W), f32 -- post-matmul mean correction.
    # bias_ref:        (1, Nout)      bias + beta @ W, f32.
    # o_ref:           (tr * W/2, Nout)
    tr, w2, c2 = xe_ref.shape
    tm = tr * w2
    # Free collapse when W2 % 8 == 0 (sublane-aligned), true for the demo.
    # TODO(synk): for real Swin stages (W2 in {7, 14, 28}) this reshape is a
    # sublane repack; switch those shapes to a manual double-buffered
    # make_async_copy that lands the strided parity rows directly into a flat
    # (tm, 2C) VMEM scratch.
    xe = xe_ref[...].reshape(tm, c2)
    xo = xo_ref[...].reshape(tm, c2)
    xe32 = xe.astype(jnp.float32)
    xo32 = xo.astype(jnp.float32)

    # LayerNorm statistics over the full 4C channels (split across the two
    # halves), in f32.  var = E[x^2] - mean^2, so no centered temporaries.
    inv_n = 1.0 / (2.0 * c2)
    s1 = (jnp.sum(xe32, axis=-1, keepdims=True)
          + jnp.sum(xo32, axis=-1, keepdims=True))
    s2 = (jnp.sum(xe32 * xe32, axis=-1, keepdims=True)
          + jnp.sum(xo32 * xo32, axis=-1, keepdims=True))
    mean = s1 * inv_n
    var = s2 * inv_n - mean * mean
    inv_std = lax.rsqrt(jnp.maximum(var, 0.0) + 1e-5)   # torch LayerNorm eps

    # Linear 4C -> 2C on the raw (uncentered) inputs as two accumulating MXU
    # matmuls (bf16 in, f32 acc).  gamma lives in we/wo, beta in bias_ref,
    # mean/inv_std are per-row scalars applied on the (tm, Nout) result.
    y = jnp.dot(xe.astype(we_ref.dtype), we_ref[...],
                preferred_element_type=jnp.float32)
    y = y + jnp.dot(xo.astype(wo_ref.dtype), wo_ref[...],
                    preferred_element_type=jnp.float32)
    y = (y - mean * csum_ref[...]) * inv_std + bias_ref[...]
    o_ref[...] = y.astype(o_ref.dtype)


def patch_merging(x, image_resolution, gamma, beta, w_t, bias, *,
                  matmul_dtype=jnp.bfloat16, out_dtype=None,
                  vmem_budget=12 * 1024 * 1024):
    """x: (B, H*W, C) -> (B, (H//2)*(W//2), 2*C). Matches PyTorch PatchMerging."""
    B, L, C = x.shape
    H, W = image_resolution
    assert L == H * W and H % 2 == 0 and W % 2 == 0
    H2, W2 = H // 2, W // 2
    BH2, L2 = B * H2, H2 * W2
    M = B * L2                               # number of merged tokens
    C2 = 2 * C                               # channels per parity half
    Nout = 2 * C                             # Linear output features
    out_dtype = x.dtype if out_dtype is None else out_dtype

    # ---- fused 2x2 merge: free contiguous view -----------------------------
    #   xr[r, p, w2, :] = x[b, 2*h2 + p, 2*w2 : 2*w2 + 2, :],  r = b*H2 + h2
    xr = x.reshape(BH2, 2, W2, C2)

    # ---- fold LayerNorm affine (gamma/beta) into the Linear -----------------
    g = gamma.astype(jnp.float32)
    bt = beta.astype(jnp.float32)
    w = w_t.astype(jnp.float32)                       # (4C, Nout)
    wp = w * g[:, None]                               # gamma-folded, f32
    csum = jnp.sum(wp, axis=0).reshape(1, Nout)       # = gamma @ W, f32
    bias_total = (bias.astype(jnp.float32) + bt @ w).reshape(1, Nout)
    #   even half channels = [x1 | x3] -> original channel idx [0:C,  2C:3C]
    #   odd  half channels = [x2 | x4] -> original channel idx [C:2C, 3C:4C]
    we = jnp.concatenate([wp[0:C], wp[2 * C:3 * C]], axis=0).astype(matmul_dtype)
    wo = jnp.concatenate([wp[C:2 * C], wp[3 * C:4 * C]], axis=0).astype(matmul_dtype)

    # ---- tile selection -----------------------------------------------------
    in_sz = jnp.dtype(x.dtype).itemsize
    out_sz = jnp.dtype(out_dtype).itemsize
    w_sz = jnp.dtype(matmul_dtype).itemsize
    c4 = 4 * C
    target_tm = 1024 if c4 <= 256 else (512 if c4 <= 1024 else 256)
    target_tr = max(1, target_tm // W2)

    # Guarantee >= 2 grid steps (DMA/compute overlap + 2nd TensorCore on v7x),
    # >= 4 if the tiles stay large enough.
    min_grid = 2 if BH2 >= 2 else 1
    if BH2 >= 4 and (pl.cdiv(BH2, 4) * W2) >= 256:
        min_grid = 4
    cap_tr = max(1, BH2 // min_grid)

    def step_bytes(d):
        tm_ = d * W2
        act = 2 * (2 * tm_ * C2 * in_sz)        # double-buffered xe + xo tiles
        outb = 2 * (tm_ * Nout * out_sz)        # double-buffered output tile
        wgt = 2 * (2 * C2 * Nout * w_sz)        # weights (conservatively 2x;
        # TODO(synk): pipeline_mode=pl.Buffered(1) on the constant weight/bias
        # specs would halve this for large C)
        tmp = (2 * tm_ * C2 + tm_ * Nout) * 4   # f32 intermediates in the body
        return act + outb + wgt + tmp

    best = 1
    for d in range(min(target_tr, cap_tr), 0, -1):
        if step_bytes(d) <= vmem_budget:
            best = d
            break
    # Prefer an even division (no ragged, masked tail) if one exists nearby;
    # otherwise accept a ragged last tile rather than collapsing tr to 1.
    tr = best
    for d in range(best, max(best // 2, 0), -1):
        if BH2 % d == 0:
            tr = d
            break
    # TODO(synk): if even tr == 1 blows the budget (very large C), split the
    # contraction with a second 'arbitrary' grid axis (f32 acc scratch +
    # pl.when init/store) instead of shrinking the row tile further.
    tm = tr * W2
    grid_steps = pl.cdiv(BH2, tr)

    out = pl.pallas_call(
        _patch_merge_kernel,
        out_shape=jax.ShapeDtypeStruct((M, Nout), out_dtype),
        grid_spec=pltpu.PrefetchScalarGridSpec(
            num_scalar_prefetch=0,
            grid=(grid_steps,),
            in_specs=[
                pl.BlockSpec((tr, None, W2, C2), lambda i: (i, 0, 0, 0)),  # even h-rows
                pl.BlockSpec((tr, None, W2, C2), lambda i: (i, 1, 0, 0)),  # odd  h-rows
                pl.BlockSpec((C2, Nout), lambda i: (0, 0)),   # gamma-folded W, even half
                pl.BlockSpec((C2, Nout), lambda i: (0, 0)),   # gamma-folded W, odd half
                pl.BlockSpec((1, Nout), lambda i: (0, 0)),    # colsum(Wp) for mean fix
                pl.BlockSpec((1, Nout), lambda i: (0, 0)),    # bias + beta @ W
            ],
            out_specs=pl.BlockSpec((tm, Nout), lambda i: (i, 0)),
        ),
        compiler_params=pltpu.CompilerParams(
            dimension_semantics=("parallel",),
            vmem_limit_bytes=32 * 1024 * 1024),
    )(xr, xr, we, wo, csum, bias_total)

    # (M, Nout) is exactly the final buffer: free reshape, no un-pad pass.
    return out.reshape(B, L2, Nout)


def reference(x, image_resolution, gamma, beta, w_t, bias):
    # Faithful f32 re-implementation of the PyTorch module.
    B, L, C = x.shape
    H, W = image_resolution
    xg = x.reshape(B, H, W, C)
    x1 = xg[:, 0::2, 0::2, :]
    x2 = xg[:, 1::2, 0::2, :]
    x3 = xg[:, 0::2, 1::2, :]
    x4 = xg[:, 1::2, 1::2, :]
    xm = jnp.concatenate([x1, x2, x3, x4], axis=-1).reshape(B, -1, 4 * C)
    mean = jnp.mean(xm, axis=-1, keepdims=True)
    var = jnp.mean((xm - mean) ** 2, axis=-1, keepdims=True)
    xn = (xm - mean) / jnp.sqrt(var + 1e-5) * gamma + beta
    return xn @ w_t + bias


if __name__ == "__main__":
    # Module config: image_resolution=(16,16), dim (C) = 32 -> 4C = 128, 2C = 64.
    B, H, W, C = 2, 16, 16, 32
    key = jax.random.PRNGKey(0)
    kx, kg, kb, kw, kbi = jax.random.split(key, 5)

    x = jax.random.normal(kx, (B, H * W, C), dtype=jnp.float32)

    # Deterministic parameter init (shapes per nn.LayerNorm(4C), nn.Linear(4C, 2C)).
    gamma = 1.0 + 0.02 * jax.random.normal(kg, (4 * C,), dtype=jnp.float32)
    beta = 0.02 * jax.random.normal(kb, (4 * C,), dtype=jnp.float32)
    w_t = jax.random.normal(kw, (4 * C, 2 * C), dtype=jnp.float32) * (1.0 / (4 * C) ** 0.5)
    bias = 0.01 * jax.random.normal(kbi, (2 * C,), dtype=jnp.float32)

    out = patch_merging(x, (H, W), gamma, beta, w_t, bias)
    out = jax.block_until_ready(out)

    ref = reference(x, (H, W), gamma, beta, w_t, bias)
    assert out.shape == (B, (H // 2) * (W // 2), 2 * C)
    # bf16 MXU operands (f32 accumulation / f32 LN stats) vs f32 reference.
    assert jnp.allclose(out, ref, atol=5e-2, rtol=3e-2), "mismatch vs reference"
    print("KERNEL_OK")
</pallas_src>

<mosaic_0001>
module attributes {stable_mosaic.version = 11 : i64} {
  func.func @_patch_merge_kernel(%arg0: i32, %arg1: memref<8x1x8x64xf32, #tpu.memory_space<vmem>>, %arg2: memref<8x1x8x64xf32, #tpu.memory_space<vmem>>, %arg3: memref<64x64xbf16, #tpu.memory_space<vmem>>, %arg4: memref<64x64xbf16, #tpu.memory_space<vmem>>, %arg5: memref<1x64xf32, #tpu.memory_space<vmem>>, %arg6: memref<1x64xf32, #tpu.memory_space<vmem>>, %arg7: memref<64x64xf32, #tpu.memory_space<vmem>>) attributes {dimension_semantics = [#tpu.dimension_semantics<parallel>], iteration_bounds = array<i64: 2>, scalar_prefetch = 0 : i64, scratch_operands = 0 : i64, tpu.core_type = #tpu.core_type<tc>, window_params = [{transform_indices = @transform_0, window_bounds = array<i64: 8, 1, 8, 64>}, {transform_indices = @transform_1, window_bounds = array<i64: 8, 1, 8, 64>}, {pipeline_mode = #tpu.pipeline_mode<synchronous>, transform_indices = @transform_2, window_bounds = array<i64: 64, 64>}, {pipeline_mode = #tpu.pipeline_mode<synchronous>, transform_indices = @transform_3, window_bounds = array<i64: 64, 64>}, {pipeline_mode = #tpu.pipeline_mode<synchronous>, transform_indices = @transform_4, window_bounds = array<i64: 1, 64>}, {pipeline_mode = #tpu.pipeline_mode<synchronous>, transform_indices = @transform_5, window_bounds = array<i64: 1, 64>}, {transform_indices = @transform_6, window_bounds = array<i64: 64, 64>}]} {
    %c0 = arith.constant 0 : index
    %c0_0 = arith.constant 0 : index
    %c0_1 = arith.constant 0 : index
    %c0_2 = arith.constant 0 : index
    %0 = vector.load %arg1[%c0, %c0_0, %c0_1, %c0_2] : memref<8x1x8x64xf32, #tpu.memory_space<vmem>>, vector<8x1x8x64xf32>
    %1 = vector.shape_cast %0 : vector<8x1x8x64xf32> to vector<8x8x64xf32>
    %2 = vector.shape_cast %1 : vector<8x8x64xf32> to vector<64x64xf32>
    %c0_3 = arith.constant 0 : index
    %c0_4 = arith.constant 0 : index
    %c0_5 = arith.constant 0 : index
    %c0_6 = arith.constant 0 : index
    %3 = vector.load %arg2[%c0_3, %c0_4, %c0_5, %c0_6] : memref<8x1x8x64xf32, #tpu.memory_space<vmem>>, vector<8x1x8x64xf32>
    %4 = vector.shape_cast %3 : vector<8x1x8x64xf32> to vector<8x8x64xf32>
    %5 = vector.shape_cast %4 : vector<8x8x64xf32> to vector<64x64xf32>
    %cst = arith.constant dense<0.000000e+00> : vector<64xf32>
    %6 = vector.multi_reduction <add>, %2, %cst [1] : vector<64x64xf32> to vector<64xf32>
    %7 = vector.shape_cast %6 : vector<64xf32> to vector<64x1xf32>
    %cst_7 = arith.constant dense<0.000000e+00> : vector<64xf32>
    %8 = vector.multi_reduction <add>, %5, %cst_7 [1] : vector<64x64xf32> to vector<64xf32>
    %9 = vector.shape_cast %8 : vector<64xf32> to vector<64x1xf32>
    %10 = arith.addf %7, %9 : vector<64x1xf32>
    %11 = arith.mulf %2, %2 : vector<64x64xf32>
    %cst_8 = arith.constant dense<0.000000e+00> : vector<64xf32>
    %12 = vector.multi_reduction <add>, %11, %cst_8 [1] : vector<64x64xf32> to vector<64xf32>
    %13 = vector.shape_cast %12 : vector<64xf32> to vector<64x1xf32>
    %14 = arith.mulf %5, %5 : vector<64x64xf32>
    %cst_9 = arith.constant dense<0.000000e+00> : vector<64xf32>
    %15 = vector.multi_reduction <add>, %14, %cst_9 [1] : vector<64x64xf32> to vector<64xf32>
    %16 = vector.shape_cast %15 : vector<64xf32> to vector<64x1xf32>
    %17 = arith.addf %13, %16 : vector<64x1xf32>
    %cst_10 = arith.constant 7.812500e-03 : f32
    %18 = vector.broadcast %cst_10 : f32 to vector<64x1xf32>
    %19 = arith.mulf %10, %18 : vector<64x1xf32>
    %cst_11 = arith.constant 7.812500e-03 : f32
    %20 = vector.broadcast %cst_11 : f32 to vector<64x1xf32>
    %21 = arith.mulf %17, %20 : vector<64x1xf32>
    %22 = arith.mulf %19, %19 : vector<64x1xf32>
    %23 = arith.subf %21, %22 : vector<64x1xf32>
    %cst_12 = arith.constant 0.000000e+00 : f32
    %24 = vector.broadcast %cst_12 : f32 to vector<64x1xf32>
    %25 = arith.maximumf %23, %24 : vector<64x1xf32>
    %cst_13 = arith.constant 9.99999974E-6 : f32
    %26 = vector.broadcast %cst_13 : f32 to vector<64x1xf32>
    %27 = arith.addf %25, %26 : vector<64x1xf32>
    %28 = math.rsqrt %27 : vector<64x1xf32>
    %29 = arith.truncf %2 : vector<64x64xf32> to vector<64x64xbf16>
    %c0_14 = arith.constant 0 : index
    %c0_15 = arith.constant 0 : index
    %30 = vector.load %arg3[%c0_14, %c0_15] : memref<64x64xbf16, #tpu.memory_space<vmem>>, vector<64x64xbf16>
    %cst_16 = arith.constant dense<0.000000e+00> : vector<64x64xf32>
    %31 = tpu.matmul %29, %30, %cst_16 {dimension_numbers = #tpu.dot_dimension_numbers<[1], [0], [0], [1], [0, 0, 1, 1], [], []>} : vector<64x64xbf16>, vector<64x64xbf16>, vector<64x64xf32> -> vector<64x64xf32>
    %32 = arith.truncf %5 : vector<64x64xf32> to vector<64x64xbf16>
    %c0_17 = arith.constant 0 : index
    %c0_18 = arith.constant 0 : index
    %33 = vector.load %arg4[%c0_17, %c0_18] : memref<64x64xbf16, #tpu.memory_space<vmem>>, vector<64x64xbf16>
    %cst_19 = arith.constant dense<0.000000e+00> : vector<64x64xf32>
    %34 = tpu.matmul %32, %33, %cst_19 {dimension_numbers = #tpu.dot_dimension_numbers<[1], [0], [0], [1], [0, 0, 1, 1], [], []>} : vector<64x64xbf16>, vector<64x64xbf16>, vector<64x64xf32> -> vector<64x64xf32>
    %35 = arith.addf %31, %34 : vector<64x64xf32>
    %c0_20 = arith.constant 0 : index
    %c0_21 = arith.constant 0 : index
    %36 = vector.load %arg5[%c0_20, %c0_21] : memref<1x64xf32, #tpu.memory_space<vmem>>, vector<1x64xf32>
    %37 = vector.broadcast %19 : vector<64x1xf32> to vector<64x64xf32>
    %38 = vector.broadcast %36 : vector<1x64xf32> to vector<64x64xf32>
    %39 = arith.mulf %37, %38 : vector<64x64xf32>
    %40 = arith.subf %35, %39 : vector<64x64xf32>
    %41 = vector.broadcast %28 : vector<64x1xf32> to vector<64x64xf32>
    %42 = arith.mulf %40, %41 : vector<64x64xf32>
    %c0_22 = arith.constant 0 : index
    %c0_23 = arith.constant 0 : index
    %43 = vector.load %arg6[%c0_22, %c0_23] : memref<1x64xf32, #tpu.memory_space<vmem>>, vector<1x64xf32>
    %44 = vector.broadcast %43 : vector<1x64xf32> to vector<64x64xf32>
    %45 = arith.addf %42, %44 : vector<64x64xf32>
    %c0_24 = arith.constant 0 : index
    %c0_25 = arith.constant 0 : index
    %46 = vector.load %arg7[%c0_24, %c0_25] : memref<64x64xf32, #tpu.memory_space<vmem>>, vector<64x64xf32>
    tpu.vector_store %arg7[%c0_24, %c0_25], %45 {strides = array<i32>} : memref<64x64xf32, #tpu.memory_space<vmem>>, vector<64x64xf32>,
    return
  }
  func.func @transform_0(%arg0: i32) -> (i32, i32, i32, i32) {
    %c0_i32 = arith.constant 0 : i32
    %c0_i32_0 = arith.constant 0 : i32
    %c0_i32_1 = arith.constant 0 : i32
    %c0_i32_2 = arith.constant 0 : i32
    return %arg0, %c0_i32, %c0_i32_0, %c0_i32_1 : i32, i32, i32, i32
  }
  func.func @transform_1(%arg0: i32) -> (i32, i32, i32, i32) {
    %c1_i32 = arith.constant 1 : i32
    %c0_i32 = arith.constant 0 : i32
    %c0_i32_0 = arith.constant 0 : i32
    %c0_i32_1 = arith.constant 0 : i32
    return %arg0, %c1_i32, %c0_i32, %c0_i32_0 : i32, i32, i32, i32
  }
  func.func @transform_2(%arg0: i32) -> (i32, i32) {
    %c0_i32 = arith.constant 0 : i32
    %c0_i32_0 = arith.constant 0 : i32
    %c0_i32_1 = arith.constant 0 : i32
    return %c0_i32, %c0_i32_0 : i32, i32
  }
  func.func @transform_3(%arg0: i32) -> (i32, i32) {
    %c0_i32 = arith.constant 0 : i32
    %c0_i32_0 = arith.constant 0 : i32
    %c0_i32_1 = arith.constant 0 : i32
    return %c0_i32, %c0_i32_0 : i32, i32
  }
  func.func @transform_4(%arg0: i32) -> (i32, i32) {
    %c0_i32 = arith.constant 0 : i32
    %c0_i32_0 = arith.constant 0 : i32
    %c0_i32_1 = arith.constant 0 : i32
    return %c0_i32, %c0_i32_0 : i32, i32
  }
  func.func @transform_5(%arg0: i32) -> (i32, i32) {
    %c0_i32 = arith.constant 0 : i32
    %c0_i32_0 = arith.constant 0 : i32
    %c0_i32_1 = arith.constant 0 : i32
    return %c0_i32, %c0_i32_0 : i32, i32
  }
  func.func @transform_6(%arg0: i32) -> (i32, i32) {
    %c0_i32 = arith.constant 0 : i32
    %c0_i32_0 = arith.constant 0 : i32
    return %arg0, %c0_i32 : i32, i32
  }
}

</mosaic_0001>

<llo_original>
// kernel: tpu_custom_call.1
$region0: #{tpu_custom_call.1}
  #allocation0 [shape = 'u32[]', space=smem, size = 0x4, offset = 0x4, fixed_abs, tag = 'smem constant byte address 0x4 - core index']
  #allocation1 [shape = 'u32[72,128]{1,0:T(1,128)}', space=vmem, size = 0x9000, scoped, tag = 'internal scratch']
  %s0 = inlined_call_operand.hbm [shape: f32[16,2,8,64], index: 0, kind: input, shape index: {}]
  %s1 = inlined_call_operand.hbm [shape: f32[16,2,8,64], index: 1, kind: input, shape index: {}]
  %s2 = inlined_call_operand.hbm [shape: bf16[64,64], index: 2, kind: input, shape index: {}]
  %s3 = inlined_call_operand.hbm [shape: bf16[64,64], index: 3, kind: input, shape index: {}]
  %s4 = inlined_call_operand.vmem [shape: f32[1,64], index: 4, kind: input, shape index: {}]
  %s5 = inlined_call_operand.vmem [shape: f32[1,64], index: 5, kind: input, shape index: {}]
  %s6 = inlined_call_operand.vmem [shape: f32[128,64], index: 6, kind: output, shape index: {}]
  %s7 = sld [smem:[#allocation0]]
  $region73: #{tpu_custom_call.1} parent=0
    _
  %s9 = ssub.s32 1, %s7
  %s10 = scalar_select 0, %s9, %s7
  $region1: #{tpu_custom_call.1} parent=0
    #allocation2 [shape = 'u8[65536]{0}', space=vmem, size = 0x10000, scoped, tag = 'input window, operand 0']
    #allocation3 [shape = 's32[2]{0}', space=sflag, size = 0x8, scoped, tag = 'scoped memory for tpu_custom_call.1']
    #allocation4 [shape = 'u8[65536]{0}', space=vmem, size = 0x10000, scoped, tag = 'input window, operand 1']
    #allocation5 [shape = 's32[2]{0}', space=sflag, size = 0x8, scoped, tag = 'scoped memory for tpu_custom_call.1']
    #allocation6 [shape = 'u8[16384]{0}', space=vmem, size = 0x4000, scoped, tag = 'input window, operand 2, single buffered']
    #allocation7 [shape = 'u8[16384]{0}', space=vmem, size = 0x4000, scoped, tag = 'input window, operand 3, single buffered']
    #allocation8 [shape = 's32[1]{0}', space=sflag, size = 0x4, scoped, tag = 'scoped memory for tpu_custom_call.1']
    %11 = vsyncpa [#allocation3], 0
    %s12 = scalar_lea.sflag [#allocation3], 1
    %13 = vsyncpa %s12, 0
    %14 = vsyncpa [#allocation5], 0
    %s15 = scalar_lea.sflag [#allocation5], 1
    %16 = vsyncpa %s15, 0
    %17 = vsyncpa [#allocation8], 0
    loop: start=0, step=1, limit=4
    $region2: #{tpu_custom_call.1} parent=1 // loop_pre_header
      _
    $region3: #{tpu_custom_call.1} parent=1 // loop_header
      %s19 = sphi 0, %s23
      %p20 = scmp.ge.s32.totalorder %s19, 4
      %s29 = sphi 0, %s31
      %s32 = sphi 0, %s29
      %s33 = sphi 0, %s32
      %s49 = sphi 0, %s33
      %s55 = sphi 0, %s57
      %s58 = sphi 0, %s55
      %s59 = sphi 0, %s58
      %s75 = sphi 0, %s59
      %s79 = sphi 0, %s79
      %s81 = sphi 0, %s79
      %s82 = sphi 0, %s81
      %s96 = sphi 0, %s82
      %s100 = sphi 0, %s100
      %s102 = sphi 0, %s100
      %s103 = sphi 0, %s102
      %s117 = sphi 0, %s103
      %s121 = sphi 0, %s121
      %s123 = sphi 0, %s121
      %s124 = sphi 0, %s123
      %s138 = sphi 0, %s124
      %s142 = sphi 0, %s142
      %s144 = sphi 0, %s142
      %s145 = sphi 0, %s144
      %s159 = sphi 0, %s145
      %s165 = sphi 0, %s167
      %s168 = sphi 0, %s165
      %s169 = sphi 0, %s168
      %s185 = sphi 0, %s169
    $region4: #{tpu_custom_call.1} parent=1 // loop_header_branch
      %22 = sbr.rel (%p20) target = $region8
    $region5: #{tpu_custom_call.1} parent=1 // loop_body
      %s24 = ssub.s32 %s19, 1
      %s25 = ssub.s32 %s19, 2
      %s26 = sadd.s32 %s19, 1
      %s27 = ssub.s32 %s19, %s26
      %p28 = scmp.eq.s32.totalorder %s27, 0
      %s30 = sadd.s32 %s29, 1
      %s31 = scalar_select %p28, %s29, %s30
      %p34 = pneg %p28
      %p35 = scmp.eq.s32.totalorder %s19, 1
      %p36 = por %p34, %p35
      %p37 = scmp.ne.s32.totalorder %s29, %s32
      %p38 = scmp.eq.s32.totalorder %s19, 0
      %p39 = por %p37, %p38
      %p40 = scmp.ne.s32.totalorder %s29, %s32
      %p41 = scmp.eq.s32.totalorder %s24, 1
      %p42 = por %p40, %p41
      %p43 = scmp.ne.s32.totalorder %s32, %s33
      %p44 = scmp.eq.s32.totalorder %s24, 0
      %p45 = por %p43, %p44
      %p46 = scmp.ne.s32.totalorder %s32, %s33
      %p47 = scmp.eq.s32.totalorder %s25, 1
      %p48 = por %p46, %p47
      %p50 = scmp.ne.s32.totalorder %s33, %s49
      %p51 = scmp.eq.s32.totalorder %s25, 0
      %p52 = por %p50, %p51
      %s53 = ssub.s32 %s19, %s26
      %p54 = scmp.eq.s32.totalorder %s53, 0
      %s56 = sadd.s32 %s55, 1
      %s57 = scalar_select %p54, %s55, %s56
      %p60 = pneg %p54
      %p61 = scmp.eq.s32.totalorder %s19, 1
      %p62 = por %p60, %p61
      %p63 = scmp.ne.s32.totalorder %s55, %s58
      %p64 = scmp.eq.s32.totalorder %s19, 0
      %p65 = por %p63, %p64
      %p66 = scmp.ne.s32.totalorder %s55, %s58
      %p67 = scmp.eq.s32.totalorder %s24, 1
      %p68 = por %p66, %p67
      %p69 = scmp.ne.s32.totalorder %s58, %s59
      %p70 = scmp.eq.s32.totalorder %s24, 0
      %p71 = por %p69, %p70
      %p72 = scmp.ne.s32.totalorder %s58, %s59
      %p73 = scmp.eq.s32.totalorder %s25, 1
      %p74 = por %p72, %p73
      %p76 = scmp.ne.s32.totalorder %s59, %s75
      %p77 = scmp.eq.s32.totalorder %s25, 0
      %p78 = por %p76, %p77
      %s80 = sadd.s32 %s79, 1
      %p83 = scmp.eq.s32.totalorder %s19, 1
      %p84 = scmp.ne.s32.totalorder %s79, %s81
      %p85 = scmp.eq.s32.totalorder %s19, 0
      %p86 = por %p84, %p85
      %p87 = scmp.ne.s32.totalorder %s79, %s81
      %p88 = scmp.eq.s32.totalorder %s24, 1
      %p89 = por %p87, %p88
      %p90 = scmp.ne.s32.totalorder %s81, %s82
      %p91 = scmp.eq.s32.totalorder %s24, 0
      %p92 = por %p90, %p91
      %p93 = scmp.ne.s32.totalorder %s81, %s82
      %p94 = scmp.eq.s32.totalorder %s25, 1
      %p95 = por %p93, %p94
      %p97 = scmp.ne.s32.totalorder %s82, %s96
      %p98 = scmp.eq.s32.totalorder %s25, 0
      %p99 = por %p97, %p98
      %s101 = sadd.s32 %s100, 1
      %p104 = scmp.eq.s32.totalorder %s19, 1
      %p105 = scmp.ne.s32.totalorder %s100, %s102
      %p106 = scmp.eq.s32.totalorder %s19, 0
      %p107 = por %p105, %p106
      %p108 = scmp.ne.s32.totalorder %s100, %s102
      %p109 = scmp.eq.s32.totalorder %s24, 1
      %p110 = por %p108, %p109
      %p111 = scmp.ne.s32.totalorder %s102, %s103
      %p112 = scmp.eq.s32.totalorder %s24, 0
      %p113 = por %p111, %p112
      %p114 = scmp.ne.s32.totalorder %s102, %s103
      %p115 = scmp.eq.s32.totalorder %s25, 1
      %p116 = por %p114, %p115
      %p118 = scmp.ne.s32.totalorder %s103, %s117
      %p119 = scmp.eq.s32.totalorder %s25, 0
      %p120 = por %p118, %p119
      %s122 = sadd.s32 %s121, 1
      %p125 = scmp.eq.s32.totalorder %s19, 1
      %p126 = scmp.ne.s32.totalorder %s121, %s123
      %p127 = scmp.eq.s32.totalorder %s19, 0
      %p128 = por %p126, %p127
      %p129 = scmp.ne.s32.totalorder %s121, %s123
      %p130 = scmp.eq.s32.totalorder %s24, 1
      %p131 = por %p129, %p130
      %p132 = scmp.ne.s32.totalorder %s123, %s124
      %p133 = scmp.eq.s32.totalorder %s24, 0
      %p134 = por %p132, %p133
      %p135 = scmp.ne.s32.totalorder %s123, %s124
      %p136 = scmp.eq.s32.totalorder %s25, 1
      %p137 = por %p135, %p136
      %p139 = scmp.ne.s32.totalorder %s124, %s138
      %p140 = scmp.eq.s32.totalorder %s25, 0
      %p141 = por %p139, %p140
      %s143 = sadd.s32 %s142, 1
      %p146 = scmp.eq.s32.totalorder %s19, 1
      %p147 = scmp.ne.s32.totalorder %s142, %s144
      %p148 = scmp.eq.s32.totalorder %s19, 0
      %p149 = por %p147, %p148
      %p150 = scmp.ne.s32.totalorder %s142, %s144
      %p151 = scmp.eq.s32.totalorder %s24, 1
      %p152 = por %p150, %p151
      %p153 = scmp.ne.s32.totalorder %s144, %s145
      %p154 = scmp.eq.s32.totalorder %s24, 0
      %p155 = por %p153, %p154
      %p156 = scmp.ne.s32.totalorder %s144, %s145
      %p157 = scmp.eq.s32.totalorder %s25, 1
      %p158 = por %p156, %p157
      %p160 = scmp.ne.s32.totalorder %s145, %s159
      %p161 = scmp.eq.s32.totalorder %s25, 0
      %p162 = por %p160, %p161
      %s163 = ssub.s32 %s19, %s26
      %p164 = scmp.eq.s32.totalorder %s163, 0
      %s166 = sadd.s32 %s165, 1
      %s167 = scalar_select %p164, %s165, %s166
      %p170 = pneg %p164
      %p171 = scmp.eq.s32.totalorder %s19, 1
      %p172 = por %p170, %p171
      %p173 = scmp.ne.s32.totalorder %s165, %s168
      %p174 = scmp.eq.s32.totalorder %s19, 0
      %p175 = por %p173, %p174
      %p176 = scmp.ne.s32.totalorder %s165, %s168
      %p177 = scmp.eq.s32.totalorder %s24, 1
      %p178 = por %p176, %p177
      %p179 = scmp.ne.s32.totalorder %s168, %s169
      %p180 = scmp.eq.s32.totalorder %s24, 0
      %p181 = por %p179, %p180
      %p182 = scmp.ne.s32.totalorder %s168, %s169
      %p183 = scmp.eq.s32.totalorder %s25, 1
      %p184 = por %p182, %p183
      %p186 = scmp.ne.s32.totalorder %s169, %s185
      %p187 = scmp.eq.s32.totalorder %s25, 0
      %p188 = por %p186, %p187
      %p189 = scmp.le.s32.totalorder 1, %s19
      %p190 = scmp.lt.s32.totalorder %s19, 3
      %p191 = pnand %p189, %p190
      %p192 = pneg %p191
      // Predicated region
      $region9: #{tpu_custom_call.1} parent=5 // pred_check
        _
      $region10: #{tpu_custom_call.1} parent=5 // pred_check_branch
        %194 = sbr.rel (%p191) target = $region12
      $region11: #{tpu_custom_call.1} parent=5 // pred_region
        %s195 = ssub.s32 %s19, 1
        // Predicated region
        $region13: #{tpu_custom_call.1} parent=11 // pred_check
          %p196 = pneg %p92
        $region14: #{tpu_custom_call.1} parent=11 // pred_check_branch
          %198 = sbr.rel (%p196) target = $region16
        $region15: #{tpu_custom_call.1} parent=11 // pred_region
          %200 = vsyncadd [#allocation5], 0
          %s201 = sshll.u32 %s2, 4
          %s202 = int_to_ptr.hbm [resolvable:$true] %s201
          %s203 = sshll.u32 [#allocation6], 4
          %s204 = int_to_ptr.vmem [resolvable:$true] %s203
          %209 = dma.hbm_to_vmem [thread:$0]  %s202, 512, %s204, [#allocation5], 64, 64, 4
        $region16: #{tpu_custom_call.1} parent=11 // pred_fallthru
          _
        // Predicated region
        $region17: #{tpu_custom_call.1} parent=11 // pred_check
          %p210 = pneg %p113
        $region18: #{tpu_custom_call.1} parent=11 // pred_check_branch
          %212 = sbr.rel (%p210) target = $region20
        $region19: #{tpu_custom_call.1} parent=11 // pred_region
          %214 = vsyncadd [#allocation8], 0
          %s215 = sshll.u32 %s3, 4
          %s216 = int_to_ptr.hbm [resolvable:$true] %s215
          %s217 = sshll.u32 [#allocation7], 4
          %s218 = int_to_ptr.vmem [resolvable:$true] %s217
          %223 = dma.hbm_to_vmem [thread:$0]  %s216, 512, %s218, [#allocation8], 64, 64, 4
        $region20: #{tpu_custom_call.1} parent=11 // pred_fallthru
          _
        // Predicated region
        $region21: #{tpu_custom_call.1} parent=11 // pred_check
          %p224 = pneg %p134
        $region22: #{tpu_custom_call.1} parent=11 // pred_check_branch
          %226 = sbr.rel (%p224) target = $region24
        $region23: #{tpu_custom_call.1} parent=11 // pred_region
          _
        $region24: #{tpu_custom_call.1} parent=11 // pred_fallthru
          _
        // Predicated region
        $region25: #{tpu_custom_call.1} parent=11 // pred_check
          %p227 = pneg %p155
        $region26: #{tpu_custom_call.1} parent=11 // pred_check_branch
          %229 = sbr.rel (%p227) target = $region28
        $region27: #{tpu_custom_call.1} parent=11 // pred_region
          _
        $region28: #{tpu_custom_call.1} parent=11 // pred_fallthru
          _
      $region12: #{tpu_custom_call.1} parent=5 // pred_fallthru
        _
      %p230 = scmp.lt.s32.totalorder %s19, 2
      // Predicated region
      $region29: #{tpu_custom_call.1} parent=5 // pred_check
        %p231 = pneg %p230
      $region30: #{tpu_custom_call.1} parent=5 // pred_check_branch
        %233 = sbr.rel (%p231) target = $region32
      $region31: #{tpu_custom_call.1} parent=5 // pred_region
        // Predicated region
        $region33: #{tpu_custom_call.1} parent=31 // pred_check
          %p234 = pneg %p39
        $region34: #{tpu_custom_call.1} parent=31 // pred_check_branch
          %236 = sbr.rel (%p234) target = $region36
        $region35: #{tpu_custom_call.1} parent=31 // pred_region
          %s237 = sand.u32 %s29, 1
          %s238 = scalar_lea.sflag [#allocation3], %s237
          %s239 = sand.u32 %s29, 1
          %s240 = smul.addr %s239, 64
          %s241 = scalar_lea.vmem [#allocation2], %s240
          %s242 = smul.u32 8, %s19
          %244 = vsyncadd %s238, 0
          %s245 = smul.addr %s242, 2
          %s246 = smul.addr %s245, 8
          %s247 = scalar_lea.hbm %s0, %s246
          %s248 = sshll.u32 %s247, 4
          %s249 = int_to_ptr.hbm [resolvable:$true] %s248
          %s250 = sshll.u32 %s241, 4
          %s251 = int_to_ptr.vmem [resolvable:$true] %s250
          %256 = dma.hbm_to_vmem [thread:$0]  %s249, 1024, %s251, %s238, 256, 128, 8
        $region36: #{tpu_custom_call.1} parent=31 // pred_fallthru
          _
        // Predicated region
        $region37: #{tpu_custom_call.1} parent=31 // pred_check
          %p257 = pneg %p65
        $region38: #{tpu_custom_call.1} parent=31 // pred_check_branch
          %259 = sbr.rel (%p257) target = $region40
        $region39: #{tpu_custom_call.1} parent=31 // pred_region
          %s260 = sand.u32 %s19, 1
          %s261 = scalar_lea.sflag [#allocation5], %s260
          %s262 = sand.u32 %s55, 1
          %s263 = smul.addr %s262, 64
          %s264 = scalar_lea.vmem [#allocation4], %s263
          %s265 = smul.u32 8, %s19
          %267 = vsyncadd %s261, 0
          %s268 = smul.addr %s265, 2
          %s269 = sadd.s32 1, %s268
          %s270 = smul.addr %s269, 8
          %s271 = scalar_lea.hbm %s1, %s270
          %s272 = sshll.u32 %s271, 4
          %s273 = int_to_ptr.hbm [resolvable:$true] %s272
          %s274 = sshll.u32 %s264, 4
          %s275 = int_to_ptr.vmem [resolvable:$true] %s274
          %280 = dma.hbm_to_vmem [thread:$0]  %s273, 1024, %s275, %s261, 256, 128, 8
        $region40: #{tpu_custom_call.1} parent=31 // pred_fallthru
          _
      $region32: #{tpu_custom_call.1} parent=5 // pred_fallthru
        _
      %p281 = scmp.le.s32.totalorder 1, %s19
      %p282 = scmp.lt.s32.totalorder %s19, 3
      %p283 = pnand %p281, %p282
      %p284 = pneg %p283
      // Predicated region
      $region41: #{tpu_custom_call.1} parent=5 // pred_check
        _
      $region42: #{tpu_custom_call.1} parent=5 // pred_check_branch
        %286 = sbr.rel (%p283) target = $region44
      $region43: #{tpu_custom_call.1} parent=5 // pred_region
        %s287 = ssub.s32 %s19, 1
        %s288 = sand.u32 %s32, 1
        %s289 = scalar_lea.sflag [#allocation3], %s288
        %s290 = sand.u32 %s32, 1
        %s291 = smul.addr %s290, 64
        %s292 = scalar_lea.vmem [#allocation2], %s291
        // Predicated region
        $region45: #{tpu_custom_call.1} parent=43 // pred_check
          %p293 = pneg %p45
        $region46: #{tpu_custom_call.1} parent=43 // pred_check_branch
          %295 = sbr.rel (%p293) target = $region48
        $region47: #{tpu_custom_call.1} parent=43 // pred_region
          %297 = dma.done %s289, 1024
        $region48: #{tpu_custom_call.1} parent=43 // pred_fallthru
          _
        %s298 = sand.u32 %s24, 1
        %s299 = scalar_lea.sflag [#allocation5], %s298
        %s300 = sand.u32 %s58, 1
        %s301 = smul.addr %s300, 64
        %s302 = scalar_lea.vmem [#allocation4], %s301
        // Predicated region
        $region49: #{tpu_custom_call.1} parent=43 // pred_check
          %p303 = pneg %p71
        $region50: #{tpu_custom_call.1} parent=43 // pred_check_branch
          %305 = sbr.rel (%p303) target = $region52
        $region51: #{tpu_custom_call.1} parent=43 // pred_region
          %307 = dma.done %s299, 1024
        $region52: #{tpu_custom_call.1} parent=43 // pred_fallthru
          _
        // Predicated region
        $region53: #{tpu_custom_call.1} parent=43 // pred_check
          %p308 = pneg %p92
        $region54: #{tpu_custom_call.1} parent=43 // pred_check_branch
          %310 = sbr.rel (%p308) target = $region56
        $region55: #{tpu_custom_call.1} parent=43 // pred_region
          %312 = dma.done [#allocation5], 512
        $region56: #{tpu_custom_call.1} parent=43 // pred_fallthru
          _
        // Predicated region
        $region57: #{tpu_custom_call.1} parent=43 // pred_check
          %p313 = pneg %p113
        $region58: #{tpu_custom_call.1} parent=43 // pred_check_branch
          %315 = sbr.rel (%p313) target = $region60
        $region59: #{tpu_custom_call.1} parent=43 // pred_region
          %317 = dma.done [#allocation8], 512
        $region60: #{tpu_custom_call.1} parent=43 // pred_fallthru
          _
        %s318 = sand.u32 %s32, 1
        %s319 = scalar_lea.sflag [#allocation3], %s318
        %s320 = sand.u32 %s32, 1
        %s321 = smul.addr %s320, 64
        %s322 = scalar_lea.vmem [#allocation2], %s321
        %p323 = pneg %p45
        %p324 = pneg %p42
        %s325 = sand.u32 %s24, 1
        %s326 = scalar_lea.sflag [#allocation5], %s325
        %s327 = sand.u32 %s58, 1
        %s328 = smul.addr %s327, 64
        %s329 = scalar_lea.vmem [#allocation4], %s328
        %p330 = pneg %p71
        %p331 = pneg %p68
        %p332 = pneg %p92
        %p333 = pneg %p89
        %p334 = pneg %p113
        %p335 = pneg %p110
        %p336 = pneg %p134
        %p337 = pneg %p131
        %p338 = pneg %p155
        %p339 = pneg %p152
        %p340 = pneg %p181
        %p341 = pneg %p178
        %s342 = smul.u32 8, %s24
        %p343 = scmp.lt.s32.totalorder %s342, 15
        %s344 = scalar_select %p343, %s342, 15
        %s345 = smul.addr %s344, 8
        %s346 = scalar_lea.vmem %s6, %s345
        %s347 = smul.u32 8, %s24
        %s348 = smul.u32 8, %s24
        %s349 = smul.u32 8, %s24
        %p350 = scmp.lt.s32.totalorder %s349, 15
        %s351 = scalar_select %p350, %s349, 15
        %s352 = smul.addr %s351, 8
        %s353 = scalar_lea.vmem %s6, %s352
        %s354 = smul.u32 8, %s24
        %v356 = vld [vmem:[%s292] sm:$0xff]
        %v357 = vld [vmem:[%s292 + $0x8] sm:$0xff]
        %v358 = vld [vmem:[%s292 + $0x10] sm:$0xff]
        %v359 = vld [vmem:[%s292 + $0x18] sm:$0xff]
        %v360 = vld [vmem:[%s292 + $0x20] sm:$0xff]
        %v361 = vld [vmem:[%s292 + $0x28] sm:$0xff]
        %v362 = vld [vmem:[%s292 + $0x30] sm:$0xff]
        %v363 = vld [vmem:[%s292 + $0x38] sm:$0xff]
        %v364 = vld [vmem:[%s302] sm:$0xff]
        %v365 = vld [vmem:[%s302 + $0x8] sm:$0xff]
        %v366 = vld [vmem:[%s302 + $0x10] sm:$0xff]
        %v367 = vld [vmem:[%s302 + $0x18] sm:$0xff]
        %v368 = vld [vmem:[%s302 + $0x20] sm:$0xff]
        %v369 = vld [vmem:[%s302 + $0x28] sm:$0xff]
        %v370 = vld [vmem:[%s302 + $0x30] sm:$0xff]
        %v371 = vld [vmem:[%s302 + $0x38] sm:$0xff]
        %vm372 = vcmask 523264
        %v373 = vsel %vm372, %v356, 0.0
        %374 = vadd.xlane.f32.xlu0 %v373
        %v375 = vpop.xlane.xlu0 %374
        %v376 = vsel %vm372, %v357, 0.0
        %377 = vadd.xlane.f32.xlu0 %v376
        %v378 = vpop.xlane.xlu0 %377
        %v379 = vsel %vm372, %v358, 0.0
        %380 = vadd.xlane.f32.xlu0 %v379
        %v381 = vpop.xlane.xlu0 %380
        %v382 = vsel %vm372, %v359, 0.0
        %383 = vadd.xlane.f32.xlu0 %v382
        %v384 = vpop.xlane.xlu0 %383
        %v385 = vsel %vm372, %v360, 0.0
        %386 = vadd.xlane.f32.xlu0 %v385
        %v387 = vpop.xlane.xlu0 %386
        %v388 = vsel %vm372, %v361, 0.0
        %389 = vadd.xlane.f32.xlu0 %v388
        %v390 = vpop.xlane.xlu0 %389
        %v391 = vsel %vm372, %v362, 0.0
        %392 = vadd.xlane.f32.xlu0 %v391
        %v393 = vpop.xlane.xlu0 %392
        %v394 = vsel %vm372, %v363, 0.0
        %395 = vadd.xlane.f32.xlu0 %v394
        %v396 = vpop.xlane.xlu0 %395
        %v397 = vsel %vm372, %v364, 0.0
        %398 = vadd.xlane.f32.xlu0 %v397
        %v399 = vpop.xlane.xlu0 %398
        %v400 = vsel %vm372, %v365, 0.0
        %401 = vadd.xlane.f32.xlu0 %v400
        %v402 = vpop.xlane.xlu0 %401
        %v403 = vsel %vm372, %v366, 0.0
        %404 = vadd.xlane.f32.xlu0 %v403
        %v405 = vpop.xlane.xlu0 %404
        %v406 = vsel %vm372, %v367, 0.0
        %407 = vadd.xlane.f32.xlu0 %v406
        %v408 = vpop.xlane.xlu0 %407
        %v409 = vsel %vm372, %v368, 0.0
        %410 = vadd.xlane.f32.xlu0 %v409
        %v411 = vpop.xlane.xlu0 %410
        %v412 = vsel %vm372, %v369, 0.0
        %413 = vadd.xlane.f32.xlu0 %v412
        %v414 = vpop.xlane.xlu0 %413
        %v415 = vsel %vm372, %v370, 0.0
        %416 = vadd.xlane.f32.xlu0 %v415
        %v417 = vpop.xlane.xlu0 %416
        %v418 = vsel %vm372, %v371, 0.0
        %419 = vadd.xlane.f32.xlu0 %v418
        %v420 = vpop.xlane.xlu0 %419
        %v421 = vadd.f32 %v375, %v399
        %v422 = vadd.f32 %v378, %v402
        %v423 = vadd.f32 %v381, %v405
        %v424 = vadd.f32 %v384, %v408
        %v425 = vadd.f32 %v387, %v411
        %v426 = vadd.f32 %v390, %v414
        %v427 = vadd.f32 %v393, %v417
        %v428 = vadd.f32 %v396, %v420
        %v429 = vmul.f32 %v356, %v356
        %v430 = vmul.f32 %v357, %v357
        %v431 = vmul.f32 %v358, %v358
        %v432 = vmul.f32 %v359, %v359
        %v433 = vmul.f32 %v360, %v360
        %v434 = vmul.f32 %v361, %v361
        %v435 = vmul.f32 %v362, %v362
        %v436 = vmul.f32 %v363, %v363
        %v437 = vsel %vm372, %v429, 0.0
        %438 = vadd.xlane.f32.xlu0 %v437
        %v439 = vpop.xlane.xlu0 %438
        %v440 = vsel %vm372, %v430, 0.0
        %441 = vadd.xlane.f32.xlu0 %v440
        %v442 = vpop.xlane.xlu0 %441
        %v443 = vsel %vm372, %v431, 0.0
        %444 = vadd.xlane.f32.xlu0 %v443
        %v445 = vpop.xlane.xlu0 %444
        %v446 = vsel %vm372, %v432, 0.0
        %447 = vadd.xlane.f32.xlu0 %v446
        %v448 = vpop.xlane.xlu0 %447
        %v449 = vsel %vm372, %v433, 0.0
        %450 = vadd.xlane.f32.xlu0 %v449
        %v451 = vpop.xlane.xlu0 %450
        %v452 = vsel %vm372, %v434, 0.0
        %453 = vadd.xlane.f32.xlu0 %v452
        %v454 = vpop.xlane.xlu0 %453
        %v455 = vsel %vm372, %v435, 0.0
        %456 = vadd.xlane.f32.xlu0 %v455
        %v457 = vpop.xlane.xlu0 %456
        %v458 = vsel %vm372, %v436, 0.0
        %459 = vadd.xlane.f32.xlu0 %v458
        %v460 = vpop.xlane.xlu0 %459
        %v461 = vmul.f32 %v364, %v364
        %v462 = vmul.f32 %v365, %v365
        %v463 = vmul.f32 %v366, %v366
        %v464 = vmul.f32 %v367, %v367
        %v465 = vmul.f32 %v368, %v368
        %v466 = vmul.f32 %v369, %v369
        %v467 = vmul.f32 %v370, %v370
        %v468 = vmul.f32 %v371, %v371
        %v469 = vsel %vm372, %v461, 0.0
        %470 = vadd.xlane.f32.xlu0 %v469
        %v471 = vpop.xlane.xlu0 %470
        %v472 = vsel %vm372, %v462, 0.0
        %473 = vadd.xlane.f32.xlu0 %v472
        %v474 = vpop.xlane.xlu0 %473
        %v475 = vsel %vm372, %v463, 0.0
        %476 = vadd.xlane.f32.xlu0 %v475
        %v477 = vpop.xlane.xlu0 %476
        %v478 = vsel %vm372, %v464, 0.0
        %479 = vadd.xlane.f32.xlu0 %v478
        %v480 = vpop.xlane.xlu0 %479
        %v481 = vsel %vm372, %v465, 0.0
        %482 = vadd.xlane.f32.xlu0 %v481
        %v483 = vpop.xlane.xlu0 %482
        %v484 = vsel %vm372, %v466, 0.0
        %485 = vadd.xlane.f32.xlu0 %v484
        %v486 = vpop.xlane.xlu0 %485
        %v487 = vsel %vm372, %v467, 0.0
        %488 = vadd.xlane.f32.xlu0 %v487
        %v489 = vpop.xlane.xlu0 %488
        %v490 = vsel %vm372, %v468, 0.0
        %491 = vadd.xlane.f32.xlu0 %v490
        %v492 = vpop.xlane.xlu0 %491
        %v493 = vadd.f32 %v439, %v471
        %v494 = vadd.f32 %v442, %v474
        %v495 = vadd.f32 %v445, %v477
        %v496 = vadd.f32 %v448, %v480
        %v497 = vadd.f32 %v451, %v483
        %v498 = vadd.f32 %v454, %v486
        %v499 = vadd.f32 %v457, %v489
        %v500 = vadd.f32 %v460, %v492
        %v501 = vmul.f32 %v421, 0.0078125
        %v502 = vmul.f32 %v422, 0.0078125
        %v503 = vmul.f32 %v423, 0.0078125
        %v504 = vmul.f32 %v424, 0.0078125
        %v505 = vmul.f32 %v425, 0.0078125
        %v506 = vmul.f32 %v426, 0.0078125
        %v507 = vmul.f32 %v427, 0.0078125
        %v508 = vmul.f32 %v428, 0.0078125
        %v509 = vmul.f32 %v493, 0.0078125
        %v510 = vmul.f32 %v494, 0.0078125
        %v511 = vmul.f32 %v495, 0.0078125
        %v512 = vmul.f32 %v496, 0.0078125
        %v513 = vmul.f32 %v497, 0.0078125
        %v514 = vmul.f32 %v498, 0.0078125
        %v515 = vmul.f32 %v499, 0.0078125
        %v516 = vmul.f32 %v500, 0.0078125
        %v517 = vmul.f32 %v501, %v501
        %v518 = vmul.f32 %v502, %v502
        %v519 = vmul.f32 %v503, %v503
        %v520 = vmul.f32 %v504, %v504
        %v521 = vmul.f32 %v505, %v505
        %v522 = vmul.f32 %v506, %v506
        %v523 = vmul.f32 %v507, %v507
        %v524 = vmul.f32 %v508, %v508
        %v525 = vsub.f32 %v509, %v517
        %v526 = vsub.f32 %v510, %v518
        %v527 = vsub.f32 %v511, %v519
        %v528 = vsub.f32 %v512, %v520
        %v529 = vsub.f32 %v513, %v521
        %v530 = vsub.f32 %v514, %v522
        %v531 = vsub.f32 %v515, %v523
        %v532 = vsub.f32 %v516, %v524
        %v533 = vmax.f32 %v525, 0.0
        %v534 = vmax.f32 %v526, 0.0
        %v535 = vmax.f32 %v527, 0.0
        %v536 = vmax.f32 %v528, 0.0
        %v537 = vmax.f32 %v529, 0.0
        %v538 = vmax.f32 %v530, 0.0
        %v539 = vmax.f32 %v531, 0.0
        %v540 = vmax.f32 %v532, 0.0
        %v541 = vadd.f32 %v533, 1e-05
        %v542 = vadd.f32 %v534, 1e-05
        %v543 = vadd.f32 %v535, 1e-05
        %v544 = vadd.f32 %v536, 1e-05
        %v545 = vadd.f32 %v537, 1e-05
        %v546 = vadd.f32 %v538, 1e-05
        %v547 = vadd.f32 %v539, 1e-05
        %v548 = vadd.f32 %v540, 1e-05
        %v549 = vrsqrt.pop %v541
        %v550 = vmul.f32 %v549, %v541
        %v551 = vmul.f32 %v550, %v549
        %v552 = vmul.f32 0.5, %v551
        %v553 = vsub.f32 1.5, %v552
        %v554 = vmul.f32 %v549, %v553
        %vm555 = vweird.f32 %v541
        %vm556 = vweird.f32 %v549
        %vm557 = vmor %vm555, %vm556
        %v558 = vsel %vm557, %v549, %v554
        %v559 = vrsqrt.pop %v542
        %v560 = vmul.f32 %v559, %v542
        %v561 = vmul.f32 %v560, %v559
        %v562 = vmul.f32 0.5, %v561
        %v563 = vsub.f32 1.5, %v562
        %v564 = vmul.f32 %v559, %v563
        %vm565 = vweird.f32 %v542
        %vm566 = vweird.f32 %v559
        %vm567 = vmor %vm565, %vm566
        %v568 = vsel %vm567, %v559, %v564
        %v569 = vrsqrt.pop %v543
        %v570 = vmul.f32 %v569, %v543
        %v571 = vmul.f32 %v570, %v569
        %v572 = vmul.f32 0.5, %v571
        %v573 = vsub.f32 1.5, %v572
        %v574 = vmul.f32 %v569, %v573
        %vm575 = vweird.f32 %v543
        %vm576 = vweird.f32 %v569
        %vm577 = vmor %vm575, %vm576
        %v578 = vsel %vm577, %v569, %v574
        %v579 = vrsqrt.pop %v544
        %v580 = vmul.f32 %v579, %v544
        %v581 = vmul.f32 %v580, %v579
        %v582 = vmul.f32 0.5, %v581
        %v583 = vsub.f32 1.5, %v582
        %v584 = vmul.f32 %v579, %v583
        %vm585 = vweird.f32 %v544
        %vm586 = vweird.f32 %v579
        %vm587 = vmor %vm585, %vm586
        %v588 = vsel %vm587, %v579, %v584
        %v589 = vrsqrt.pop %v545
        %v590 = vmul.f32 %v589, %v545
        %v591 = vmul.f32 %v590, %v589
        %v592 = vmul.f32 0.5, %v591
        %v593 = vsub.f32 1.5, %v592
        %v594 = vmul.f32 %v589, %v593
        %vm595 = vweird.f32 %v545
        %vm596 = vweird.f32 %v589
        %vm597 = vmor %vm595, %vm596
        %v598 = vsel %vm597, %v589, %v594
        %v599 = vrsqrt.pop %v546
        %v600 = vmul.f32 %v599, %v546
        %v601 = vmul.f32 %v600, %v599
        %v602 = vmul.f32 0.5, %v601
        %v603 = vsub.f32 1.5, %v602
        %v604 = vmul.f32 %v599, %v603
        %vm605 = vweird.f32 %v546
        %vm606 = vweird.f32 %v599
        %vm607 = vmor %vm605, %vm606
        %v608 = vsel %vm607, %v599, %v604
        %v609 = vrsqrt.pop %v547
        %v610 = vmul.f32 %v609, %v547
        %v611 = vmul.f32 %v610, %v609
        %v612 = vmul.f32 0.5, %v611
        %v613 = vsub.f32 1.5, %v612
        %v614 = vmul.f32 %v609, %v613
        %vm615 = vweird.f32 %v547
        %vm616 = vweird.f32 %v609
        %vm617 = vmor %vm615, %vm616
        %v618 = vsel %vm617, %v609, %v614
        %v619 = vrsqrt.pop %v548
        %v620 = vmul.f32 %v619, %v548
        %v621 = vmul.f32 %v620, %v619
        %v622 = vmul.f32 0.5, %v621
        %v623 = vsub.f32 1.5, %v622
        %v624 = vmul.f32 %v619, %v623
        %vm625 = vweird.f32 %v548
        %vm626 = vweird.f32 %v619
        %vm627 = vmor %vm625, %vm626
        %v628 = vsel %vm627, %v619, %v624
        %v629 = vpack.c.bf16 %v357, %v356
        %v630 = vpack.c.bf16 %v359, %v358
        %v631 = vpack.c.bf16 %v361, %v360
        %v632 = vpack.c.bf16 %v363, %v362
        %v633 = vld [vmem:[#allocation6] sm:$0xf]
        %v634 = vld [vmem:[#allocation6 + $0x4] sm:$0xf]
        %v635 = vld [vmem:[#allocation6 + $0x8] sm:$0xf]
        %v636 = vld [vmem:[#allocation6 + $0xc] sm:$0xf]
        %v637 = vld [vmem:[#allocation6 + $0x10] sm:$0xf]
        %v638 = vld [vmem:[#allocation6 + $0x14] sm:$0xf]
        %v639 = vld [vmem:[#allocation6 + $0x18] sm:$0xf]
        %v640 = vld [vmem:[#allocation6 + $0x1c] sm:$0xf]
        %v641 = vpack.c.bf16 %v365, %v364
        %v642 = vpack.c.bf16 %v367, %v366
        %v643 = vpack.c.bf16 %v369, %v368
        %v644 = vpack.c.bf16 %v371, %v370
        %v645 = vld [vmem:[#allocation7] sm:$0xf]
        %v646 = vld [vmem:[#allocation7 + $0x4] sm:$0xf]
        %v647 = vld [vmem:[#allocation7 + $0x8] sm:$0xf]
        %v648 = vld [vmem:[#allocation7 + $0xc] sm:$0xf]
        %v649 = vld [vmem:[#allocation7 + $0x10] sm:$0xf]
        %v650 = vld [vmem:[#allocation7 + $0x14] sm:$0xf]
        %v651 = vld [vmem:[#allocation7 + $0x18] sm:$0xf]
        %v652 = vld [vmem:[#allocation7 + $0x1c] sm:$0xf]
        %v661 = vunpack.c.l.b16 %v645
        %v662 = vunpack.c.l.b16 %v646
        %v663 = vunpack.c.l.b16 %v647
        %v664 = vunpack.c.l.b16 %v648
        %v665 = vunpack.c.l.b16 %v649
        %v666 = vunpack.c.l.b16 %v650
        %v667 = vunpack.c.l.b16 %v651
        %v668 = vunpack.c.l.b16 %v652
        %v669 = vpack.c.b16 %v662, %v661
        %v670 = vpack.c.b16 %v664, %v663
        %v671 = vpack.c.b16 %v666, %v665
        %v672 = vpack.c.b16 %v668, %v667
        %v678 = vsel %vm372, %v641, 0
        %v681 = vsel %vm372, %v642, 0
        %v684 = vsel %vm372, %v643, 0
        %v687 = vsel %vm372, %v644, 0
        %689 = vmatpush.bf16.msra.mxu0 0
        %690 = vmatpush.bf16.msra.mxu0 0
        %691 = vmatpush.bf16.msra.mxu0 0
        %692 = vmatpush.bf16.msra.mxu0 0
        %693 = vmatpush.bf16.msra.mxu0 %v672
        %694 = vmatpush.bf16.msra.mxu0 %v671
        %695 = vmatpush.bf16.msra.mxu0 %v670
        %696 = vmatpush.bf16.msra.mxu0 %v669
        %697 = vmatmul.bf16.gmra.mxu0 %v678
        %v698 = vpop.f32.mrf.mxu0
        %v699 = vadd.f32 0.0, %v698
        %v700 = vpop.f32.mrf.mxu0
        %v701 = vadd.f32 0.0, %v700
        %702 = vmatmul.bf16.gmra.mxu0 %v681
        %v703 = vpop.f32.mrf.mxu0
        %v704 = vadd.f32 0.0, %v703
        %v705 = vpop.f32.mrf.mxu0
        %v706 = vadd.f32 0.0, %v705
        %707 = vmatmul.bf16.gmra.mxu0 %v684
        %v708 = vpop.f32.mrf.mxu0
        %v709 = vadd.f32 0.0, %v708
        %v710 = vpop.f32.mrf.mxu0
        %v711 = vadd.f32 0.0, %v710
        %712 = vmatmul.bf16.gmra.mxu0 %v687
        %v713 = vpop.f32.mrf.mxu0
        %v714 = vadd.f32 0.0, %v713
        %v715 = vpop.f32.mrf.mxu0
        %v716 = vadd.f32 0.0, %v715
        %717 = vdwg.mxu0
        %v726 = vunpack.c.l.b16 %v633
        %v727 = vunpack.c.l.b16 %v634
        %v728 = vunpack.c.l.b16 %v635
        %v729 = vunpack.c.l.b16 %v636
        %v730 = vunpack.c.l.b16 %v637
        %v731 = vunpack.c.l.b16 %v638
        %v732 = vunpack.c.l.b16 %v639
        %v733 = vunpack.c.l.b16 %v640
        %v734 = vpack.c.b16 %v727, %v726
        %v735 = vpack.c.b16 %v729, %v728
        %v736 = vpack.c.b16 %v731, %v730
        %v737 = vpack.c.b16 %v733, %v732
        %v743 = vsel %vm372, %v629, 0
        %v746 = vsel %vm372, %v630, 0
        %v749 = vsel %vm372, %v631, 0
        %v752 = vsel %vm372, %v632, 0
        %754 = vmatpush.bf16.msra.mxu0 0
        %755 = vmatpush.bf16.msra.mxu0 0
        %756 = vmatpush.bf16.msra.mxu0 0
        %757 = vmatpush.bf16.msra.mxu0 0
        %758 = vmatpush.bf16.msra.mxu0 %v737
        %759 = vmatpush.bf16.msra.mxu0 %v736
        %760 = vmatpush.bf16.msra.mxu0 %v735
        %761 = vmatpush.bf16.msra.mxu0 %v734
        %762 = vmatmul.bf16.gmra.mxu0 %v743
        %v763 = vpop.f32.mrf.mxu0
        %v764 = vadd.f32 %v699, %v763
        %v765 = vpop.f32.mrf.mxu0
        %v766 = vadd.f32 %v701, %v765
        %767 = vmatmul.bf16.gmra.mxu0 %v746
        %v768 = vpop.f32.mrf.mxu0
        %v769 = vadd.f32 %v704, %v768
        %v770 = vpop.f32.mrf.mxu0
        %v771 = vadd.f32 %v706, %v770
        %772 = vmatmul.bf16.gmra.mxu0 %v749
        %v773 = vpop.f32.mrf.mxu0
        %v774 = vadd.f32 %v709, %v773
        %v775 = vpop.f32.mrf.mxu0
        %v776 = vadd.f32 %v711, %v775
        %777 = vmatmul.bf16.gmra.mxu0 %v752
        %v778 = vpop.f32.mrf.mxu0
        %v779 = vadd.f32 %v714, %v778
        %v780 = vpop.f32.mrf.mxu0
        %v781 = vadd.f32 %v716, %v780
        %782 = vdwg.mxu0
        %v783 = vld [vmem:[%s4] sm:$0x1]
        %v785 = vperm.slane %v783, 0
        %v787 = vmul.f32 %v501, %v785
        %v788 = vmul.f32 %v502, %v785
        %v789 = vmul.f32 %v503, %v785
        %v790 = vmul.f32 %v504, %v785
        %v791 = vmul.f32 %v505, %v785
        %v792 = vmul.f32 %v506, %v785
        %v793 = vmul.f32 %v507, %v785
        %v794 = vmul.f32 %v508, %v785
        %v795 = vsub.f32 %v764, %v787
        %v796 = vsub.f32 %v766, %v788
        %v797 = vsub.f32 %v769, %v789
        %v798 = vsub.f32 %v771, %v790
        %v799 = vsub.f32 %v774, %v791
        %v800 = vsub.f32 %v776, %v792
        %v801 = vsub.f32 %v779, %v793
        %v802 = vsub.f32 %v781, %v794
        %v803 = vmul.f32 %v795, %v558
        %v804 = vmul.f32 %v796, %v568
        %v805 = vmul.f32 %v797, %v578
        %v806 = vmul.f32 %v798, %v588
        %v807 = vmul.f32 %v799, %v598
        %v808 = vmul.f32 %v800, %v608
        %v809 = vmul.f32 %v801, %v618
        %v810 = vmul.f32 %v802, %v628
        %v811 = vld [vmem:[%s5] sm:$0x1]
        %v813 = vperm.slane %v811, 0
        %v815 = vadd.f32 %v803, %v813
        %v816 = vadd.f32 %v804, %v813
        %v817 = vadd.f32 %v805, %v813
        %v818 = vadd.f32 %v806, %v813
        %v819 = vadd.f32 %v807, %v813
        %v820 = vadd.f32 %v808, %v813
        %v821 = vadd.f32 %v809, %v813
        %v822 = vadd.f32 %v810, %v813
        %823 = vst.msk [vmem:[%s353] sm:$0xff] %vm372, %v815
        %824 = vst.msk [vmem:[%s353 + $0x8] sm:$0xff] %vm372, %v816
        %825 = vst.msk [vmem:[%s353 + $0x10] sm:$0xff] %vm372, %v817
        %826 = vst.msk [vmem:[%s353 + $0x18] sm:$0xff] %vm372, %v818
        %827 = vst.msk [vmem:[%s353 + $0x20] sm:$0xff] %vm372, %v819
        %828 = vst.msk [vmem:[%s353 + $0x28] sm:$0xff] %vm372, %v820
        %829 = vst.msk [vmem:[%s353 + $0x30] sm:$0xff] %vm372, %v821
        %830 = vst.msk [vmem:[%s353 + $0x38] sm:$0xff] %vm372, %v822
        %s831 = smul.u32 8, %s24
        %p832 = scmp.lt.s32.totalorder %s831, 15
        %s833 = scalar_select %p832, %s831, 15
        %s834 = smul.addr %s833, 8
        %s835 = scalar_lea.vmem %s6, %s834
        // Predicated region
        $region61: #{tpu_custom_call.1} parent=43 // pred_check
          %p836 = pneg %p178
        $region62: #{tpu_custom_call.1} parent=43 // pred_check_branch
          %838 = sbr.rel (%p836) target = $region64
        $region63: #{tpu_custom_call.1} parent=43 // pred_region
          %s839 = smul.u32 8, %s24
        $region64: #{tpu_custom_call.1} parent=43 // pred_fallthru
          _
      $region44: #{tpu_custom_call.1} parent=5 // pred_fallthru
        _
      %p840 = scmp.le.s32.totalorder 2, %s19
      // Predicated region
      $region65: #{tpu_custom_call.1} parent=5 // pred_check
        %p841 = pneg %p840
      $region66: #{tpu_custom_call.1} parent=5 // pred_check_branch
        %843 = sbr.rel (%p841) target = $region68
      $region67: #{tpu_custom_call.1} parent=5 // pred_region
        %s844 = ssub.s32 %s19, 2
        // Predicated region
        $region69: #{tpu_custom_call.1} parent=67 // pred_check
          %p845 = pneg %p184
        $region70: #{tpu_custom_call.1} parent=67 // pred_check_branch
          %847 = sbr.rel (%p845) target = $region72
        $region71: #{tpu_custom_call.1} parent=67 // pred_region
          %s848 = smul.u32 8, %s25
          %p849 = scmp.lt.s32.totalorder %s848, 15
          %s850 = scalar_select %p849, %s848, 15
          %s851 = smul.addr %s850, 8
          %s852 = scalar_lea.vmem %s6, %s851
        $region72: #{tpu_custom_call.1} parent=67 // pred_fallthru
          _
      $region68: #{tpu_custom_call.1} parent=5 // pred_fallthru
        _
    $region6: #{tpu_custom_call.1} parent=1 // loop_footer
      %s23 = sadd.s32 1, %s19
    $region7: #{tpu_custom_call.1} parent=1 // loop_footer_branch
      %18 = sbr.rel target = $region3
    $region8: #{tpu_custom_call.1} parent=1 // loop_exit
      _
    %853 = vsyncpa [#allocation3], 1
    %s854 = scalar_lea.sflag [#allocation3], 1
    %855 = vsyncpa %s854, 1
    %856 = vsyncpa [#allocation5], 1
    %s857 = scalar_lea.sflag [#allocation5], 1
    %858 = vsyncpa %s857, 1
    %859 = vsyncpa [#allocation8], 1

</llo_original>
